<compile_context>
chip_gen: v7x
topology: tpu7x:2x2x1
jax: 0.10.0
libtpu: 0.0.40
codegen_flags: <defaults>
</compile_context>

<pallas_src>
import functools

import jax
import jax.numpy as jnp
from jax import lax
from jax.experimental import pallas as pl
from jax.experimental.pallas import tpu as pltpu


def ada_layer_norm_kernel(x_ref, scale_ref, shift_ref, o_ref, *, eps):
    """Fused LayerNorm (last dim, no LN affine) + adaptive scale/shift.

    x_ref:     (bB, tT, D)  input tile, original dtype
    scale_ref: (bB, 1,  D)  pre-gathered embedding rows for these batch rows
    shift_ref: (bB, 1,  D)
    o_ref:     (bB, tT, D)  output tile, original dtype
    """
    x = x_ref[...].astype(jnp.float32)                       # (bB, tT, D)
    inv_d = jnp.float32(1.0 / x.shape[-1])
    s = jnp.sum(x, axis=-1, keepdims=True) * inv_d           # mean           (bB, tT, 1)
    ss = jnp.sum(x * x, axis=-1, keepdims=True) * inv_d      # E[x^2]
    var = ss - s * s                                         # biased var (matches F.layer_norm)
    inv = lax.rsqrt(var + eps)                               # EUP transcendental
    x_hat = (x - s) * inv
    scale = scale_ref[...].astype(jnp.float32)               # (bB, 1, D) -> broadcasts over T
    shift = shift_ref[...].astype(jnp.float32)
    o_ref[...] = (x_hat * scale + shift).astype(o_ref.dtype)


def _choose_tiles(B, T, D, itemsize, target_block_bytes=6 << 20):
    """Pick (bB, tT) so one x block is up to ~target_block_bytes.

    Double-buffered input + output => ~4x block bytes of VMEM, kept well under the
    v7x 32 MiB scoped / 64 MiB physical budget.
    """
    rows_budget = max(1, target_block_bytes // max(1, D * itemsize))  # (.,D) rows per block
    if T <= rows_budget:
        # Whole sequence fits; fold batch rows to fill the block.
        tT = T
        bB = max(1, min(B, rows_budget // max(1, T)))
    else:
        # Tile the sequence axis; keep tT a multiple of 8 for (8,128) layout.
        tT = min(T, max(8, (rows_budget // 8) * 8))
        bB = 1
    return bB, tT


def ada_layer_norm_pallas(x, cond_embedding_id, scale_emb, shift_emb, *, eps=1e-6):
    """x: (B, T, D); cond_embedding_id: (B,) int; scale_emb/shift_emb: (num_embeddings, D).

    Returns (B, T, D) in x.dtype: layer_norm(x) * scale[id] + shift[id] per batch row.
    """
    B, T, D = x.shape
    cond_ids = cond_embedding_id.astype(jnp.int32)

    # Tiny (B, D) gathers done once in the wrapper; reshaped to (B, 1, D) so the
    # BlockSpec's last two dims are (1, D) == full dims (no (8,128) constraint issues).
    scale_g = jnp.take(scale_emb, cond_ids, axis=0)[:, None, :]
    shift_g = jnp.take(shift_emb, cond_ids, axis=0)[:, None, :]

    bB, tT = _choose_tiles(B, T, D, jnp.dtype(x.dtype).itemsize)
    grid = (pl.cdiv(B, bB), pl.cdiv(T, tT))

    grid_spec = pl.GridSpec(
        grid=grid,
        in_specs=[
            pl.BlockSpec((bB, tT, D), lambda bi, ti: (bi, ti, 0)),
            pl.BlockSpec((bB, 1, D), lambda bi, ti: (bi, 0, 0)),
            pl.BlockSpec((bB, 1, D), lambda bi, ti: (bi, 0, 0)),
        ],
        out_specs=pl.BlockSpec((bB, tT, D), lambda bi, ti: (bi, ti, 0)),
    )

    return pl.pallas_call(
        functools.partial(ada_layer_norm_kernel, eps=eps),
        out_shape=jax.ShapeDtypeStruct((B, T, D), x.dtype),
        grid_spec=grid_spec,
        compiler_params=pltpu.CompilerParams(
            dimension_semantics=("parallel", "parallel"),
            vmem_limit_bytes=40 * 1024 * 1024,
        ),
    )(x, scale_g, shift_g)


def ada_layer_norm_reference(x, cond_embedding_id, scale_emb, shift_emb, *, eps=1e-6):
    """Pure-JAX reference matching the PyTorch module semantics."""
    xf = x.astype(jnp.float32)
    mean = jnp.mean(xf, axis=-1, keepdims=True)
    var = jnp.mean((xf - mean) ** 2, axis=-1, keepdims=True)
    x_hat = (xf - mean) / jnp.sqrt(var + eps)
    scale = scale_emb[cond_embedding_id].astype(jnp.float32)   # (B, D)
    shift = shift_emb[cond_embedding_id].astype(jnp.float32)   # (B, D)
    return (x_hat * scale[:, None, :] + shift[:, None, :]).astype(x.dtype)


if __name__ == "__main__":
    # Small shapes consistent with the module: batch=2, seq=8, embedding_dim=128,
    # num_embeddings=8.  embedding_dim kept a multiple of 128 for lane-dense vregs.
    B, T, D = 2, 8, 128
    NUM_EMB = 8
    EPS = 1e-6

    key = jax.random.PRNGKey(0)
    k_x, k_scale, k_shift, k_id = jax.random.split(key, 4)

    x = jax.random.normal(k_x, (B, T, D), dtype=jnp.float32)
    # PyTorch init is ones/zeros; perturb so the gather + affine path is exercised.
    scale_emb = 1.0 + 0.1 * jax.random.normal(k_scale, (NUM_EMB, D), dtype=jnp.float32)
    shift_emb = 0.1 * jax.random.normal(k_shift, (NUM_EMB, D), dtype=jnp.float32)
    cond_embedding_id = jax.random.randint(k_id, (B,), 0, NUM_EMB, dtype=jnp.int32)

    y = ada_layer_norm_pallas(x, cond_embedding_id, scale_emb, shift_emb, eps=EPS)
    y = jax.block_until_ready(y)

    y_ref = ada_layer_norm_reference(x, cond_embedding_id, scale_emb, shift_emb, eps=EPS)
    assert y.shape == (B, T, D)
    assert y.dtype == x.dtype
    assert jnp.allclose(y, y_ref, rtol=1e-5, atol=1e-4), "mismatch vs JAX reference"

    print("KERNEL_OK")
</pallas_src>

<mosaic_0001>
module attributes {stable_mosaic.version = 11 : i64} {
  func.func @ada_layer_norm_kernel(%arg0: i32, %arg1: i32, %arg2: memref<2x8x128xf32, #tpu.memory_space<vmem>>, %arg3: memref<2x1x128xf32, #tpu.memory_space<vmem>>, %arg4: memref<2x1x128xf32, #tpu.memory_space<vmem>>, %arg5: memref<2x8x128xf32, #tpu.memory_space<vmem>>) attributes {dimension_semantics = [#tpu.dimension_semantics<parallel>, #tpu.dimension_semantics<parallel>], iteration_bounds = array<i64: 1, 1>, scalar_prefetch = 0 : i64, scratch_operands = 0 : i64, tpu.core_type = #tpu.core_type<tc>, window_params = [{transform_indices = @transform_0, window_bounds = array<i64: 2, 8, 128>}, {transform_indices = @transform_1, window_bounds = array<i64: 2, 1, 128>}, {transform_indices = @transform_2, window_bounds = array<i64: 2, 1, 128>}, {transform_indices = @transform_3, window_bounds = array<i64: 2, 8, 128>}]} {
    %c0 = arith.constant 0 : index
    %c0_0 = arith.constant 0 : index
    %c0_1 = arith.constant 0 : index
    %0 = vector.load %arg2[%c0, %c0_0, %c0_1] : memref<2x8x128xf32, #tpu.memory_space<vmem>>, vector<2x8x128xf32>
    %cst = arith.constant dense<0.000000e+00> : vector<2x8xf32>
    %1 = vector.multi_reduction <add>, %0, %cst [2] : vector<2x8x128xf32> to vector<2x8xf32>
    %2 = vector.shape_cast %1 : vector<2x8xf32> to vector<2x8x1xf32>
    %cst_2 = arith.constant 7.812500e-03 : f32
    %3 = vector.broadcast %cst_2 : f32 to vector<2x8x1xf32>
    %4 = arith.mulf %2, %3 : vector<2x8x1xf32>
    %5 = arith.mulf %0, %0 : vector<2x8x128xf32>
    %cst_3 = arith.constant dense<0.000000e+00> : vector<2x8xf32>
    %6 = vector.multi_reduction <add>, %5, %cst_3 [2] : vector<2x8x128xf32> to vector<2x8xf32>
    %7 = vector.shape_cast %6 : vector<2x8xf32> to vector<2x8x1xf32>
    %cst_4 = arith.constant 7.812500e-03 : f32
    %8 = vector.broadcast %cst_4 : f32 to vector<2x8x1xf32>
    %9 = arith.mulf %7, %8 : vector<2x8x1xf32>
    %10 = arith.mulf %4, %4 : vector<2x8x1xf32>
    %11 = arith.subf %9, %10 : vector<2x8x1xf32>
    %cst_5 = arith.constant 9.99999997E-7 : f32
    %12 = vector.broadcast %cst_5 : f32 to vector<2x8x1xf32>
    %13 = arith.addf %11, %12 : vector<2x8x1xf32>
    %14 = math.rsqrt %13 : vector<2x8x1xf32>
    %15 = vector.broadcast %4 : vector<2x8x1xf32> to vector<2x8x128xf32>
    %16 = arith.subf %0, %15 : vector<2x8x128xf32>
    %17 = vector.broadcast %14 : vector<2x8x1xf32> to vector<2x8x128xf32>
    %18 = arith.mulf %16, %17 : vector<2x8x128xf32>
    %c0_6 = arith.constant 0 : index
    %c0_7 = arith.constant 0 : index
    %c0_8 = arith.constant 0 : index
    %19 = vector.load %arg3[%c0_6, %c0_7, %c0_8] : memref<2x1x128xf32, #tpu.memory_space<vmem>>, vector<2x1x128xf32>
    %c0_9 = arith.constant 0 : index
    %c0_10 = arith.constant 0 : index
    %c0_11 = arith.constant 0 : index
    %20 = vector.load %arg4[%c0_9, %c0_10, %c0_11] : memref<2x1x128xf32, #tpu.memory_space<vmem>>, vector<2x1x128xf32>
    %21 = vector.broadcast %19 : vector<2x1x128xf32> to vector<2x8x128xf32>
    %22 = arith.mulf %18, %21 : vector<2x8x128xf32>
    %23 = vector.broadcast %20 : vector<2x1x128xf32> to vector<2x8x128xf32>
    %24 = arith.addf %22, %23 : vector<2x8x128xf32>
    %c0_12 = arith.constant 0 : index
    %c0_13 = arith.constant 0 : index
    %c0_14 = arith.constant 0 : index
    %25 = vector.load %arg5[%c0_12, %c0_13, %c0_14] : memref<2x8x128xf32, #tpu.memory_space<vmem>>, vector<2x8x128xf32>
    tpu.vector_store %arg5[%c0_12, %c0_13, %c0_14], %24 {strides = array<i32>} : memref<2x8x128xf32, #tpu.memory_space<vmem>>, vector<2x8x128xf32>,
    return
  }
  func.func @transform_0(%arg0: i32, %arg1: i32) -> (i32, i32, i32) {
    %c0_i32 = arith.constant 0 : i32
    %c0_i32_0 = arith.constant 0 : i32
    return %arg0, %arg1, %c0_i32 : i32, i32, i32
  }
  func.func @transform_1(%arg0: i32, %arg1: i32) -> (i32, i32, i32) {
    %c0_i32 = arith.constant 0 : i32
    %c0_i32_0 = arith.constant 0 : i32
    %c0_i32_1 = arith.constant 0 : i32
    return %arg0, %c0_i32, %c0_i32_0 : i32, i32, i32
  }
  func.func @transform_2(%arg0: i32, %arg1: i32) -> (i32, i32, i32) {
    %c0_i32 = arith.constant 0 : i32
    %c0_i32_0 = arith.constant 0 : i32
    %c0_i32_1 = arith.constant 0 : i32
    return %arg0, %c0_i32, %c0_i32_0 : i32, i32, i32
  }
  func.func @transform_3(%arg0: i32, %arg1: i32) -> (i32, i32, i32) {
    %c0_i32 = arith.constant 0 : i32
    %c0_i32_0 = arith.constant 0 : i32
    return %arg0, %arg1, %c0_i32 : i32, i32, i32
  }
}

</mosaic_0001>

<llo_original>
// kernel: tpu_custom_call.1
$region0: #{tpu_custom_call.1}
  #allocation0 [shape = 'u32[]', space=smem, size = 0x4, offset = 0x4, fixed_abs, tag = 'smem constant byte address 0x4 - core index']
  #allocation1 [shape = 'u32[144,128]{1,0:T(1,128)}', space=vmem, size = 0x12000, scoped, tag = 'internal scratch']
  %s0 = inlined_call_operand.hbm [shape: f32[2,8,128], index: 0, kind: input, shape index: {}]
  %s1 = inlined_call_operand.vmem [shape: f32[2,1,128], index: 1, kind: input, shape index: {}]
  %s2 = inlined_call_operand.vmem [shape: f32[2,1,128], index: 2, kind: input, shape index: {}]
  %s3 = inlined_call_operand.hbm [shape: f32[2,8,128], index: 3, kind: output, shape index: {}]
  %s4 = sld [smem:[#allocation0]]
  $region26: #{tpu_custom_call.1} parent=0
    _
  %s6 = ssub.s32 1, %s4
  %s7 = scalar_select 0, %s6, %s4
  $region1: #{tpu_custom_call.1} parent=0
    #allocation2 [shape = 'u8[8192]{0}', space=vmem, size = 0x2000, scoped, tag = 'input window, operand 0, single buffered']
    #allocation3 [shape = 's32[1]{0}', space=sflag, size = 0x4, scoped, tag = 'scoped memory for tpu_custom_call.1']
    #allocation4 [shape = 's32[1]{0}', space=sflag, size = 0x4, scoped, tag = 'scoped memory for tpu_custom_call.1']
    #allocation5 [shape = 'u8[8192]{0}', space=vmem, size = 0x2000, scoped, tag = 'output window, operand 0, single buffered']
    %8 = vsyncpa [#allocation3], 0
    %9 = vsyncpa [#allocation4], 0
    // Predicated region
    $region2: #{tpu_custom_call.1} parent=1 // pred_check
      _
    $region3: #{tpu_custom_call.1} parent=1 // pred_check_branch
      %11 = sbr.rel (0) target = $region5
    $region4: #{tpu_custom_call.1} parent=1 // pred_region
      %s13 = ssub.s32 256, 256
      %14 = vsyncadd [#allocation3], %s13
      %s15 = sshll.u32 [#allocation2], 4
      %s16 = int_to_ptr.vmem [resolvable:$true] %s15
      %21 = dma.hbm_to_vmem [thread:$0]  %s0, 256, %s16, [#allocation3], 128, 128, 8
    $region5: #{tpu_custom_call.1} parent=1 // pred_fallthru
      _
    // Predicated region
    $region6: #{tpu_custom_call.1} parent=1 // pred_check
      _
    $region7: #{tpu_custom_call.1} parent=1 // pred_check_branch
      %23 = sbr.rel (0) target = $region9
    $region8: #{tpu_custom_call.1} parent=1 // pred_region
      _
    $region9: #{tpu_custom_call.1} parent=1 // pred_fallthru
      _
    // Predicated region
    $region10: #{tpu_custom_call.1} parent=1 // pred_check
      _
    $region11: #{tpu_custom_call.1} parent=1 // pred_check_branch
      %25 = sbr.rel (0) target = $region13
    $region12: #{tpu_custom_call.1} parent=1 // pred_region
      _
    $region13: #{tpu_custom_call.1} parent=1 // pred_fallthru
      _
    // Predicated region
    $region14: #{tpu_custom_call.1} parent=1 // pred_check
      _
    $region15: #{tpu_custom_call.1} parent=1 // pred_check_branch
      %27 = sbr.rel (0) target = $region17
    $region16: #{tpu_custom_call.1} parent=1 // pred_region
      %28 = dma.done [#allocation3], 256
    $region17: #{tpu_custom_call.1} parent=1 // pred_fallthru
      _
    %v29 = vld [vmem:[#allocation2] sm:$0xff]
    %v30 = vld [vmem:[#allocation2 + $0x8] sm:$0xff]
    %31 = vadd.xlane.f32.xlu0 %v29
    %v32 = vpop.xlane.xlu0 %31
    %33 = vadd.xlane.f32.xlu0 %v30
    %v34 = vpop.xlane.xlu0 %33
    %v35 = vmul.f32 %v32, 0.0078125
    %v36 = vmul.f32 %v34, 0.0078125
    %v37 = vmul.f32 %v29, %v29
    %v38 = vmul.f32 %v30, %v30
    %39 = vadd.xlane.f32.xlu0 %v37
    %v40 = vpop.xlane.xlu0 %39
    %41 = vadd.xlane.f32.xlu0 %v38
    %v42 = vpop.xlane.xlu0 %41
    %v43 = vmul.f32 %v40, 0.0078125
    %v44 = vmul.f32 %v42, 0.0078125
    %v45 = vmul.f32 %v35, %v35
    %v46 = vmul.f32 %v36, %v36
    %v47 = vsub.f32 %v43, %v45
    %v48 = vsub.f32 %v44, %v46
    %v49 = vadd.f32 %v47, 1e-06
    %v50 = vadd.f32 %v48, 1e-06
    %v51 = vrsqrt.pop %v49
    %v52 = vrsqrt.pop %v50
    %v53 = vsub.f32 %v29, %v35
    %v54 = vsub.f32 %v30, %v36
    %v55 = vmul.f32 %v53, %v51
    %v56 = vmul.f32 %v54, %v52
    %v57 = vld [vmem:[%s1] sm:$0x1]
    %v58 = vld [vmem:[%s1 + $0x1] sm:$0x1]
    %v59 = vld [vmem:[%s2] sm:$0x1]
    %v60 = vld [vmem:[%s2 + $0x1] sm:$0x1]
    %v63 = vlaneseq
    %v64 = vshrl.u32 %v63, 7
    %v65 = vsub.s32 0, %v64
    %v66 = vrot.slane %v57, %v65
    %v67 = vlaneseq
    %v68 = vshrl.u32 %v67, 7
    %v69 = vsub.s32 0, %v68
    %v70 = vrot.slane %v58, %v69
    %v73 = vmul.f32 %v55, %v66
    %v74 = vmul.f32 %v56, %v70
    %v77 = vlaneseq
    %v78 = vshrl.u32 %v77, 7
    %v79 = vsub.s32 0, %v78
    %v80 = vrot.slane %v59, %v79
    %v81 = vlaneseq
    %v82 = vshrl.u32 %v81, 7
    %v83 = vsub.s32 0, %v82
    %v84 = vrot.slane %v60, %v83
    %v87 = vadd.f32 %v73, %v80
    %v88 = vadd.f32 %v74, %v84
    %89 = vst [vmem:[#allocation5] sm:$0xff] %v87
    %90 = vst [vmem:[#allocation5 + $0x8] sm:$0xff] %v88
    // Predicated region
    $region18: #{tpu_custom_call.1} parent=1 // pred_check
      _
    $region19: #{tpu_custom_call.1} parent=1 // pred_check_branch
      %92 = sbr.rel (0) target = $region21
    $region20: #{tpu_custom_call.1} parent=1 // pred_region
      %s94 = ssub.s32 256, 256
      %95 = vsyncadd [#allocation4], %s94
      %s96 = sshll.u32 [#allocation5], 4
      %s97 = int_to_ptr.vmem [resolvable:$true] %s96
      %102 = dma.vmem_to_hbm [thread:$0]  %s97, 256, %s3, [#allocation4], 128, 128, 8
    $region21: #{tpu_custom_call.1} parent=1 // pred_fallthru
      _
    // Predicated region
    $region22: #{tpu_custom_call.1} parent=1 // pred_check
      _
    $region23: #{tpu_custom_call.1} parent=1 // pred_check_branch
      %104 = sbr.rel (0) target = $region25
    $region24: #{tpu_custom_call.1} parent=1 // pred_region
      %105 = dma.done [#allocation4], 256
    $region25: #{tpu_custom_call.1} parent=1 // pred_fallthru
      _
    %106 = vsyncpa [#allocation3], 1
    %107 = vsyncpa [#allocation4], 1

</llo_original>
